<compile_context>
chip_gen: v7x
topology: tpu7x:2x2x1
jax: 0.10.0
libtpu: 0.0.40
codegen_flags: <defaults>
</compile_context>

<pallas_src>
import jax
import jax.numpy as jnp
from jax.experimental import pallas as pl
from jax.experimental.pallas import tpu as pltpu


def _fusion_kernel(pred_ref, cw_ref, out_ref):
    # pred_ref: VMEM (M, C, tB)   -- batch on the lane axis
    # cw_ref  : VMEM (C, M)       -- combined per-(class, matrix) weights, f32
    # out_ref : VMEM (C, tB)
    m_total = pred_ref.shape[0]
    cw = cw_ref[...]
    if cw.dtype != jnp.float32:
        cw = cw.astype(jnp.float32)

    acc = None
    # Static unroll over matrices (M is tiny, e.g. 2): one slab live at a time.
    for m in range(m_total):
        slab = pred_ref[m]                      # (C, tB)
        if slab.dtype != jnp.float32:
            slab = slab.astype(jnp.float32)
        term = slab * cw[:, m:m + 1]            # broadcast (C, 1) along lanes
        acc = term if acc is None else acc + term

    out_ref[...] = acc.astype(out_ref.dtype)


def _pick_tile_b(num_matrices, num_classes, batch,
                 dtype_bytes=4, vmem_budget=16 * 1024 * 1024):
    """Tile size along the (lane-mapped) batch axis."""
    if batch <= 2048:
        return batch                            # single / full-extent blocks
    # double-buffered input tile + double-buffered output tile, per column
    per_col = (num_matrices * num_classes * dtype_bytes * 2
               + num_classes * dtype_bytes * 2)
    tb = vmem_budget // max(per_col, 1)
    tb = max(128, (tb // 128) * 128)            # (8,128) constraint: lane dim
    return min(tb, 2048)


def probability_fusion_v4(pred, weights, res_weight):
    """pred: list of (B, C) arrays or a stacked (M, B, C) array.
    weights: (M, C); res_weight: scalar.
    Returns (weighted_matrix (B, C), normalized_weights (M, C))."""
    if isinstance(pred, (list, tuple)):
        pred_stack = jnp.stack(pred, axis=0)
    else:
        pred_stack = pred
    M, B, C = pred_stack.shape

    # --- tiny weight math stays in the wrapper (XLA) ---------------------
    w = weights.astype(jnp.float32)
    nw = jax.nn.softmax(w, axis=0)                          # (M, C)
    s = jax.nn.sigmoid(jnp.asarray(res_weight, jnp.float32))
    cw = (1.0 - s) * nw + s / jnp.float32(M)                # (M, C)
    cw_t = cw.T                                             # (C, M)

    # --- lane-dense layout: batch on the lane axis ------------------------
    pred_t = jnp.transpose(pred_stack, (0, 2, 1))           # (M, C, B)

    tB = _pick_tile_b(M, C, B)
    grid = (pl.cdiv(B, tB),)

    out_t = pl.pallas_call(
        _fusion_kernel,
        out_shape=jax.ShapeDtypeStruct((C, B), pred_stack.dtype),
        grid_spec=pltpu.PrefetchScalarGridSpec(
            num_scalar_prefetch=0,
            grid=grid,
            in_specs=[
                pl.BlockSpec((M, C, tB), lambda i: (0, 0, i)),
                pl.BlockSpec((C, M), lambda i: (0, 0)),
            ],
            out_specs=pl.BlockSpec((C, tB), lambda i: (0, i)),
        ),
        compiler_params=pltpu.CompilerParams(
            dimension_semantics=("parallel",)),
    )(pred_t, cw_t)

    weighted = out_t.T                                      # (B, C)
    return weighted, nw.astype(weights.dtype)


def _reference(pred_list, weights, res_weight):
    """Pure-JAX reference mirroring the PyTorch forward."""
    nw = jax.nn.softmax(weights, axis=0)                    # (M, C)
    simple_fusion = sum(mat * nw[i] for i, mat in enumerate(pred_list))
    residual = sum(pred_list) / len(pred_list)
    s = jax.nn.sigmoid(res_weight)
    weighted = (1.0 - s) * simple_fusion + s * residual
    return weighted, nw


if __name__ == "__main__":
    num_matrices = 2
    num_classes = 7
    batch = 8

    key = jax.random.PRNGKey(0)
    k_w, k_p0, k_p1 = jax.random.split(key, 3)

    # "parameters": uniform [0,1) like torch.rand, res_weight = 0.1
    weights = jax.random.uniform(k_w, (num_matrices, num_classes), jnp.float32)
    res_weight = jnp.float32(0.1)

    # predictions: list of (batch, num_classes) probability-like matrices
    pred_list = [
        jax.nn.softmax(jax.random.normal(k_p0, (batch, num_classes), jnp.float32), axis=-1),
        jax.nn.softmax(jax.random.normal(k_p1, (batch, num_classes), jnp.float32), axis=-1),
    ]

    weighted, norm_w = probability_fusion_v4(pred_list, weights, res_weight)
    jax.block_until_ready((weighted, norm_w))

    ref_weighted, ref_nw = _reference(pred_list, weights, res_weight)

    assert weighted.shape == (batch, num_classes)
    assert norm_w.shape == (num_matrices, num_classes)
    assert jnp.allclose(weighted, ref_weighted, atol=1e-5, rtol=1e-5), "weighted mismatch"
    assert jnp.allclose(norm_w, ref_nw, atol=1e-5, rtol=1e-5), "normalized weights mismatch"

    print("KERNEL_OK")
</pallas_src>

<mosaic_0001>
module attributes {stable_mosaic.version = 11 : i64} {
  func.func @_fusion_kernel(%arg0: i32, %arg1: memref<2x7x8xf32, #tpu.memory_space<vmem>>, %arg2: memref<7x2xf32, #tpu.memory_space<vmem>>, %arg3: memref<7x8xf32, #tpu.memory_space<vmem>>) attributes {dimension_semantics = [#tpu.dimension_semantics<parallel>], iteration_bounds = array<i64: 1>, scalar_prefetch = 0 : i64, scratch_operands = 0 : i64, tpu.core_type = #tpu.core_type<tc>, window_params = [{transform_indices = @transform_0, window_bounds = array<i64: 2, 7, 8>}, {pipeline_mode = #tpu.pipeline_mode<synchronous>, transform_indices = @transform_1, window_bounds = array<i64: 7, 2>}, {transform_indices = @transform_2, window_bounds = array<i64: 7, 8>}]} {
    %c0 = arith.constant 0 : index
    %c0_0 = arith.constant 0 : index
    %0 = vector.load %arg2[%c0, %c0_0] : memref<7x2xf32, #tpu.memory_space<vmem>>, vector<7x2xf32>
    %c0_1 = arith.constant 0 : index
    %c0_2 = arith.constant 0 : index
    %c0_3 = arith.constant 0 : index
    %1 = vector.load %arg1[%c0_1, %c0_2, %c0_3] : memref<2x7x8xf32, #tpu.memory_space<vmem>>, vector<1x7x8xf32>
    %2 = vector.shape_cast %1 : vector<1x7x8xf32> to vector<7x8xf32>
    %3 = vector.extract_strided_slice %0 {offsets = [0, 0], sizes = [7, 1], strides = [1, 1]} : vector<7x2xf32> to vector<7x1xf32>
    %4 = vector.broadcast %3 : vector<7x1xf32> to vector<7x8xf32>
    %5 = arith.mulf %2, %4 : vector<7x8xf32>
    %c1 = arith.constant 1 : index
    %c0_4 = arith.constant 0 : index
    %c0_5 = arith.constant 0 : index
    %6 = vector.load %arg1[%c1, %c0_4, %c0_5] : memref<2x7x8xf32, #tpu.memory_space<vmem>>, vector<1x7x8xf32>
    %7 = vector.shape_cast %6 : vector<1x7x8xf32> to vector<7x8xf32>
    %8 = vector.extract_strided_slice %0 {offsets = [0, 1], sizes = [7, 1], strides = [1, 1]} : vector<7x2xf32> to vector<7x1xf32>
    %9 = vector.broadcast %8 : vector<7x1xf32> to vector<7x8xf32>
    %10 = arith.mulf %7, %9 : vector<7x8xf32>
    %11 = arith.addf %5, %10 : vector<7x8xf32>
    %c0_6 = arith.constant 0 : index
    %c0_7 = arith.constant 0 : index
    %12 = vector.load %arg3[%c0_6, %c0_7] : memref<7x8xf32, #tpu.memory_space<vmem>>, vector<7x8xf32>
    tpu.vector_store %arg3[%c0_6, %c0_7], %11 {strides = array<i32>} : memref<7x8xf32, #tpu.memory_space<vmem>>, vector<7x8xf32>,
    return
  }
  func.func @transform_0(%arg0: i32) -> (i32, i32, i32) {
    %c0_i32 = arith.constant 0 : i32
    %c0_i32_0 = arith.constant 0 : i32
    %c0_i32_1 = arith.constant 0 : i32
    return %c0_i32, %c0_i32_0, %arg0 : i32, i32, i32
  }
  func.func @transform_1(%arg0: i32) -> (i32, i32) {
    %c0_i32 = arith.constant 0 : i32
    %c0_i32_0 = arith.constant 0 : i32
    %c0_i32_1 = arith.constant 0 : i32
    return %c0_i32, %c0_i32_0 : i32, i32
  }
  func.func @transform_2(%arg0: i32) -> (i32, i32) {
    %c0_i32 = arith.constant 0 : i32
    %c0_i32_0 = arith.constant 0 : i32
    return %c0_i32, %arg0 : i32, i32
  }
}

</mosaic_0001>

<llo_original>
// kernel: tpu_custom_call.1
$region0: #{tpu_custom_call.1}
  #allocation0 [shape = 'u32[]', space=smem, size = 0x4, offset = 0x4, fixed_abs, tag = 'smem constant byte address 0x4 - core index']
  #allocation1 [shape = 'u32[144,128]{1,0:T(1,128)}', space=vmem, size = 0x12000, scoped, tag = 'internal scratch']
  %s0 = inlined_call_operand.vmem [shape: f32[2,7,8], index: 0, kind: input, shape index: {}]
  %s1 = inlined_call_operand.vmem [shape: f32[7,2], index: 1, kind: input, shape index: {}]
  %s2 = inlined_call_operand.hbm [shape: f32[7,8], index: 2, kind: output, shape index: {}]
  %s3 = sld [smem:[#allocation0]]
  $region18: #{tpu_custom_call.1} parent=0
    _
  %s5 = ssub.s32 1, %s3
  %s6 = scalar_select 0, %s5, %s3
  $region1: #{tpu_custom_call.1} parent=0
    #allocation2 [shape = 'u8[4096]{0}', space=vmem, size = 0x1000, scoped, tag = 'output window, operand 0, single buffered']
    #allocation3 [shape = 's32[1]{0}', space=sflag, size = 0x4, scoped, tag = 'scoped memory for tpu_custom_call.1']
    %7 = vsyncpa [#allocation3], 0
    // Predicated region
    $region2: #{tpu_custom_call.1} parent=1 // pred_check
      _
    $region3: #{tpu_custom_call.1} parent=1 // pred_check_branch
      %9 = sbr.rel (0) target = $region5
    $region4: #{tpu_custom_call.1} parent=1 // pred_region
      _
    $region5: #{tpu_custom_call.1} parent=1 // pred_fallthru
      _
    // Predicated region
    $region6: #{tpu_custom_call.1} parent=1 // pred_check
      _
    $region7: #{tpu_custom_call.1} parent=1 // pred_check_branch
      %11 = sbr.rel (0) target = $region9
    $region8: #{tpu_custom_call.1} parent=1 // pred_region
      _
    $region9: #{tpu_custom_call.1} parent=1 // pred_fallthru
      _
    %v12 = vld [vmem:[%s1] sm:$0x7f]
    %v13 = vld [vmem:[%s0] sm:$0x7f]
    %15 = vset.pattern.permute.xlu0 0
    %16 = vperm.xlu0 %15, %v12
    %v17 = vpop.permute.xlu0 %16
    %v19 = vmul.f32 %v13, %v17
    %s20 = scalar_lea.vmem %s0, 8
    %v21 = vld [vmem:[%s20] sm:$0x7f]
    %22 = vset.pattern.permute.xlu0 1
    %23 = vperm.xlu0 %22, %v12
    %v24 = vpop.permute.xlu0 %23
    %v26 = vmul.f32 %v21, %v24
    %v27 = vadd.f32 %v19, %v26
    %vm28 = vcmask 63488
    %29 = vst.msk [vmem:[#allocation2] sm:$0x7f] %vm28, %v27
    // Predicated region
    $region10: #{tpu_custom_call.1} parent=1 // pred_check
      _
    $region11: #{tpu_custom_call.1} parent=1 // pred_check_branch
      %31 = sbr.rel (0) target = $region13
    $region12: #{tpu_custom_call.1} parent=1 // pred_region
      %s33 = ssub.s32 128, 128
      %34 = vsyncadd [#allocation3], %s33
      %s36 = sshll.u32 [#allocation2], 4
      %s37 = int_to_ptr.vmem [resolvable:$true] %s36
      %39 = dma.vmem_to_hbm [thread:$0]  %s37, 128, %s2, [#allocation3]
    $region13: #{tpu_custom_call.1} parent=1 // pred_fallthru
      _
    // Predicated region
    $region14: #{tpu_custom_call.1} parent=1 // pred_check
      _
    $region15: #{tpu_custom_call.1} parent=1 // pred_check_branch
      %41 = sbr.rel (0) target = $region17
    $region16: #{tpu_custom_call.1} parent=1 // pred_region
      %42 = dma.done [#allocation3], 128
    $region17: #{tpu_custom_call.1} parent=1 // pred_fallthru
      _
    %43 = vsyncpa [#allocation3], 1

</llo_original>
